<compile_context>
chip_gen: v6e
topology: v6e:2x2x1
jax: 0.10.0
libtpu: 0.0.40
codegen_flags: <defaults>
</compile_context>

<pallas_src>
import functools

import jax
import jax.numpy as jnp
import numpy as np
from jax import lax
from jax.experimental import pallas as pl
from jax.experimental.pallas import tpu as pltpu

BN_EPS = 1e-5


def _round_up(x, m):
    return (x + m - 1) // m * m


def _cdiv(a, b):
    return (a + b - 1) // b


def _vmem_limit(working_set_bytes):
    # 2x headroom, floored at the 32 MiB scoped default and capped at v7x's
    # 64 MiB physical VMEM so the same limit is safe on every generation.
    return int(min(max(2 * working_set_bytes, 32 * 1024 * 1024), 64 * 1024 * 1024))


# --------------------------------------------------------------------------- #
# Pass 1: conv (MXU matmul) + ReLU + per-tile per-channel statistics
# --------------------------------------------------------------------------- #
def _mm_relu_stats_store(w, patches, mask, y_ref, stats_ref):
    """w: (C_out_pad, K) bf16; patches: (K, TILE) bf16; mask: (1, TILE) f32.

    Writes:
      y_ref    : (1, C_out_pad, TILE) bf16   conv + ReLU (lane-dense store)
      stats_ref: (1, 1, 2, C_out_pad) f32    [sum, sum_sq] over valid columns,
                                             channels on the lane axis.
    """
    acc = jnp.dot(w, patches, preferred_element_type=jnp.float32)   # MXU, f32 acc
    acc = jnp.maximum(acc, 0.0)                                     # ReLU (VPU)
    y_ref[...] = acc.astype(y_ref.dtype)[None]                      # lane-dense bf16 store
    yv = acc * mask                                                 # zero padded/garbage cols
    st = jnp.concatenate(
        [jnp.sum(yv, axis=1, keepdims=True),
         jnp.sum(yv * yv, axis=1, keepdims=True)],
        axis=1)                                                     # (C_out_pad, 2)
    stats_ref[...] = st.T[None, None]                               # (1, 1, 2, C_out_pad)


def _fused_conv_kernel(w_ref, x0_ref, x1_ref, mask_ref, y_ref, stats_ref, *, k, wp):
    """Fused-im2col conv for stride==1.

    x0_ref/x1_ref: (1, C_in_pad, TILE) bf16, flat-image tiles t and t+1 (halo).
    The k*k kernel taps are statically shifted lane slices of the concatenated
    window; stacking them on the K axis builds the patch matrix in-register.
    """
    tl = x0_ref.shape[2]
    window = jnp.concatenate([x0_ref[0], x1_ref[0]], axis=1)        # (C_in_pad, 2*TILE)
    taps = [window[:, ky * wp + kx: ky * wp + kx + tl]
            for ky in range(k) for kx in range(k)]
    patches = jnp.concatenate(taps, axis=0)                         # (K, TILE), K order (ky,kx,c)
    _mm_relu_stats_store(w_ref[...], patches, mask_ref[...], y_ref, stats_ref)


def _im2col_conv_kernel(w_ref, p_ref, mask_ref, y_ref, stats_ref):
    """Fallback for stride > 1: patches pre-built (bf16) by the wrapper."""
    _mm_relu_stats_store(w_ref[...], p_ref[0], mask_ref[...], y_ref, stats_ref)


# --------------------------------------------------------------------------- #
# Pass 2: y * scale + shift (gamma/beta folded in), in place over y
# --------------------------------------------------------------------------- #
def _bn_apply_kernel(scale_ref, shift_ref, y_ref, o_ref):
    y = y_ref[...].astype(jnp.float32)
    o_ref[...] = (y * scale_ref[...][None] + shift_ref[...][None]).astype(o_ref.dtype)


@functools.partial(
    jax.jit, static_argnames=("kernel_size", "stride", "padding", "tile_l"))
def conv_block_forward(x, weight, gamma, beta, *, kernel_size, stride=1,
                       padding=0, tile_l=1024):
    """x: (N, C_in, H, W) f32; weight: (C_out, C_in, kH, kW) as in PyTorch."""
    assert tile_l % 128 == 0
    n, c_in, h, w = x.shape
    c_out = weight.shape[0]
    k = kernel_size

    hp, wp = h + 2 * padding, w + 2 * padding
    oh = (hp - k) // stride + 1
    ow = (wp - k) // stride + 1

    c_in_pad = _round_up(c_in, 8)
    # Sublane quantum for tiny layers; multiple of 16 (bf16 packing) otherwise.
    # For production-sized C_out, align to the MXU row quantum (128/256) instead.
    c_out_pad = 8 if c_out <= 8 else _round_up(c_out, 16)
    k_dim = k * k * c_in_pad

    # bf16 BEFORE padding / patch building: halves every x-derived buffer.
    x_bf = x.astype(jnp.bfloat16)
    x_bf = jnp.pad(
        x_bf, ((0, 0), (0, c_in_pad - c_in), (padding, padding), (padding, padding)))

    # weight (C_out, C_in, kH, kW) -> (C_out_pad, K) with K ordered (ky, kx, c).
    w_mat = jnp.transpose(weight, (0, 2, 3, 1))
    w_mat = jnp.pad(w_mat, ((0, c_out_pad - c_out), (0, 0), (0, 0), (0, c_in_pad - c_in)))
    w_mat = w_mat.reshape(c_out_pad, k_dim).astype(jnp.bfloat16)

    if stride == 1:
        # ---- fused-im2col fast path ------------------------------------------
        pitch = wp                  # row pitch of the flat output layout
        l = oh * pitch              # flat positions per image (incl. (k-1) garbage cols/row)
        halo = (k - 1) * wp + (k - 1)
        tl = max(_round_up(halo, 128), min(tile_l, _round_up(l, 128)))
        t_tiles = _cdiv(l, tl)
        l_pad = t_tiles * tl
        x_len = (t_tiles + 1) * tl  # +1 tile so the "next tile" halo block always exists

        x_flat = x_bf.reshape(n, c_in_pad, hp * wp)
        x_flat = jnp.pad(x_flat, ((0, 0), (0, 0), (0, x_len - hp * wp)))

        pos = jnp.arange(l_pad, dtype=jnp.int32)
        mask = (((pos % wp) < ow) & (pos < l)).astype(jnp.float32).reshape(1, l_pad)

        est = (2 * c_out_pad * k_dim * 2          # weights (double buffered)
               + 2 * 2 * c_in_pad * tl * 2        # two x inputs, double buffered
               + 2 * c_out_pad * tl * 2           # y output blocks
               + 2 * c_in_pad * tl * 2            # concatenated window temp
               + 2 * k_dim * tl * 2               # in-register/VMEM patch temp
               + c_out_pad * tl * 4)              # f32 accumulator
        kernel = functools.partial(_fused_conv_kernel, k=k, wp=wp)
        y, stats = pl.pallas_call(
            kernel,
            out_shape=(
                jax.ShapeDtypeStruct((n, c_out_pad, l_pad), jnp.bfloat16),
                jax.ShapeDtypeStruct((n, t_tiles, 2, c_out_pad), jnp.float32),
            ),
            grid=(n, t_tiles),
            in_specs=[
                pl.BlockSpec((c_out_pad, k_dim), lambda i, t: (0, 0)),        # weights, resident
                pl.BlockSpec((1, c_in_pad, tl), lambda i, t: (i, 0, t)),      # x tile t
                pl.BlockSpec((1, c_in_pad, tl), lambda i, t: (i, 0, t + 1)),  # x tile t+1 (halo)
                pl.BlockSpec((1, tl), lambda i, t: (0, t)),                   # validity mask
            ],
            out_specs=(
                pl.BlockSpec((1, c_out_pad, tl), lambda i, t: (i, 0, t)),
                pl.BlockSpec((1, 1, 2, c_out_pad), lambda i, t: (i, t, 0, 0)),
            ),
            compiler_params=pltpu.CompilerParams(
                dimension_semantics=("parallel", "parallel"),
                vmem_limit_bytes=_vmem_limit(est)),
        )(w_mat, x_flat, x_flat, mask)
    else:
        # ---- stride > 1: im2col fallback (bf16 patches, per-image layout) ----
        pitch = ow
        l = oh * ow
        tl = max(128, min(tile_l, _round_up(l, 128)))
        t_tiles = _cdiv(l, tl)
        l_pad = t_tiles * tl

        cols = []
        for ky in range(k):
            for kx in range(k):
                patch = lax.slice(
                    x_bf, (0, 0, ky, kx),
                    (n, c_in_pad, ky + (oh - 1) * stride + 1, kx + (ow - 1) * stride + 1),
                    (1, 1, stride, stride))                # (N, C_in_pad, OH, OW)
                cols.append(patch.reshape(n, c_in_pad, l))
        patches = jnp.concatenate(cols, axis=1)            # (N, K, L), K order (ky, kx, c)
        patches = jnp.pad(patches, ((0, 0), (0, 0), (0, l_pad - l)))

        pos = jnp.arange(l_pad, dtype=jnp.int32)
        mask = (pos < l).astype(jnp.float32).reshape(1, l_pad)

        est = (2 * c_out_pad * k_dim * 2 + 2 * k_dim * tl * 2
               + 2 * c_out_pad * tl * 2 + c_out_pad * tl * 4)
        y, stats = pl.pallas_call(
            _im2col_conv_kernel,
            out_shape=(
                jax.ShapeDtypeStruct((n, c_out_pad, l_pad), jnp.bfloat16),
                jax.ShapeDtypeStruct((n, t_tiles, 2, c_out_pad), jnp.float32),
            ),
            grid=(n, t_tiles),
            in_specs=[
                pl.BlockSpec((c_out_pad, k_dim), lambda i, t: (0, 0)),
                pl.BlockSpec((1, k_dim, tl), lambda i, t: (i, 0, t)),
                pl.BlockSpec((1, tl), lambda i, t: (0, t)),
            ],
            out_specs=(
                pl.BlockSpec((1, c_out_pad, tl), lambda i, t: (i, 0, t)),
                pl.BlockSpec((1, 1, 2, c_out_pad), lambda i, t: (i, t, 0, 0)),
            ),
            compiler_params=pltpu.CompilerParams(
                dimension_semantics=("parallel", "parallel"),
                vmem_limit_bytes=_vmem_limit(est)),
        )(w_mat, patches, mask)

    # ---- exact batch statistics + fold gamma/beta (tiny, plain JAX) ----------
    sums = jnp.sum(stats, axis=(0, 1))                # (2, C_out_pad)
    count = n * oh * ow                               # true element count per channel
    mean = sums[0] / count
    # TODO(synk): E[y^2]-E[y]^2 in f32 can lose precision when mean^2 >> var
    # (post-ReLU activations); use a Welford/two-pass formulation at scale.
    var = jnp.maximum(sums[1] / count - mean * mean, 0.0)
    inv_std = lax.rsqrt(var + BN_EPS)
    g = jnp.pad(gamma.astype(jnp.float32), (0, c_out_pad - c_out))
    b = jnp.pad(beta.astype(jnp.float32), (0, c_out_pad - c_out))
    scale = (g * inv_std).reshape(c_out_pad, 1)
    shift = (b - mean * g * inv_std).reshape(c_out_pad, 1)

    # ---- pass 2: y*scale + shift, bf16 in place over y, large lane tiles -----
    tile2 = tl
    while tile2 * 2 <= 8192 and l_pad % (tile2 * 2) == 0:
        tile2 *= 2
    est2 = 2 * 2 * c_out_pad * tile2 * 2 + 2 * c_out_pad * 4
    y_bn = pl.pallas_call(
        _bn_apply_kernel,
        out_shape=jax.ShapeDtypeStruct((n, c_out_pad, l_pad), jnp.bfloat16),
        grid=(n, l_pad // tile2),
        in_specs=[
            pl.BlockSpec((c_out_pad, 1), lambda i, t: (0, 0)),       # scale (resident)
            pl.BlockSpec((c_out_pad, 1), lambda i, t: (0, 0)),       # shift (resident)
            pl.BlockSpec((1, c_out_pad, tile2), lambda i, t: (i, 0, t)),
        ],
        out_specs=pl.BlockSpec((1, c_out_pad, tile2), lambda i, t: (i, 0, t)),
        input_output_aliases={2: 0},                                 # in place over y
        compiler_params=pltpu.CompilerParams(
            dimension_semantics=("parallel", "parallel"),
            vmem_limit_bytes=_vmem_limit(est2)),
    )(scale, shift, y)

    # ---- epilogue: strip padded channels / garbage columns, cast to f32 ------
    out = y_bn[:, :c_out, : oh * pitch].reshape(n, c_out, oh, pitch)[:, :, :, :ow]
    return out.astype(jnp.float32)


def _reference(x_nchw, weight, gamma, beta, stride, padding):
    """Pure-JAX reference (lax.conv) for the correctness check."""
    y = lax.conv_general_dilated(
        x_nchw.astype(jnp.float32),
        weight.astype(jnp.float32),
        window_strides=(stride, stride),
        padding=[(padding, padding), (padding, padding)],
        dimension_numbers=("NCHW", "OIHW", "NCHW"),
    )
    y = jnp.maximum(y, 0.0)
    mean = jnp.mean(y, axis=(0, 2, 3), keepdims=True)
    var = jnp.mean((y - mean) ** 2, axis=(0, 2, 3), keepdims=True)
    g = gamma.reshape(1, -1, 1, 1)
    b = beta.reshape(1, -1, 1, 1)
    return (y - mean) * lax.rsqrt(var + BN_EPS) * g + b


if __name__ == "__main__":
    # ConvBlock(in_channels=4, out_channels=8, kernel_size=3, stride=1,
    #           padding=0, bn=True)
    N, C_IN, H, W = 2, 4, 16, 16
    C_OUT, KSIZE, STRIDE, PAD = 8, 3, 1, 0

    key = jax.random.PRNGKey(0)
    k1, k2 = jax.random.split(key)
    x = jax.random.normal(k1, (N, C_IN, H, W), dtype=jnp.float32)
    fan_in = C_IN * KSIZE * KSIZE
    weight = jax.random.normal(k2, (C_OUT, C_IN, KSIZE, KSIZE), dtype=jnp.float32)
    weight = weight * (1.0 / np.sqrt(fan_in))
    gamma = jnp.ones((C_OUT,), dtype=jnp.float32)   # PyTorch BatchNorm2d default init
    beta = jnp.zeros((C_OUT,), dtype=jnp.float32)

    out = conv_block_forward(
        x, weight, gamma, beta, kernel_size=KSIZE, stride=STRIDE, padding=PAD)
    out = jax.block_until_ready(out)
    assert out.shape == (N, C_OUT, H - KSIZE + 1, W - KSIZE + 1)

    # Reference on bf16-rounded inputs (kernel feeds the MXU bf16 operands and
    # stores intermediates in bf16, accumulating / reducing in f32), so the
    # comparison tolerance covers bf16 storage + accumulation-order noise.
    x_q = x.astype(jnp.bfloat16).astype(jnp.float32)
    w_q = weight.astype(jnp.bfloat16).astype(jnp.float32)
    ref = jax.block_until_ready(_reference(x_q, w_q, gamma, beta, STRIDE, PAD))
    np.testing.assert_allclose(np.asarray(out), np.asarray(ref), rtol=3e-2, atol=3e-2)

    print("KERNEL_OK")
</pallas_src>

<mosaic_0001>
module attributes {stable_mosaic.version = 11 : i64} {
  func.func @_fused_conv_kernel(%arg0: i32, %arg1: i32, %arg2: memref<8x72xbf16, #tpu.memory_space<vmem>>, %arg3: memref<1x8x256xbf16, #tpu.memory_space<vmem>>, %arg4: memref<1x8x256xbf16, #tpu.memory_space<vmem>>, %arg5: memref<1x256xf32, #tpu.memory_space<vmem>>, %arg6: memref<1x8x256xbf16, #tpu.memory_space<vmem>>, %arg7: memref<1x1x2x8xf32, #tpu.memory_space<vmem>>) attributes {dimension_semantics = [#tpu.dimension_semantics<parallel>, #tpu.dimension_semantics<parallel>], iteration_bounds = array<i64: 2, 1>, scalar_prefetch = 0 : i64, scratch_operands = 0 : i64, tpu.core_type = #tpu.core_type<tc>, window_params = [{pipeline_mode = #tpu.pipeline_mode<synchronous>, transform_indices = @transform_0, window_bounds = array<i64: 8, 72>}, {transform_indices = @transform_1, window_bounds = array<i64: 1, 8, 256>}, {transform_indices = @transform_2, window_bounds = array<i64: 1, 8, 256>}, {transform_indices = @transform_3, window_bounds = array<i64: 1, 256>}, {transform_indices = @transform_4, window_bounds = array<i64: 1, 8, 256>}, {transform_indices = @transform_5, window_bounds = array<i64: 1, 1, 2, 8>}]} {
    %c0 = arith.constant 0 : index
    %c0_0 = arith.constant 0 : index
    %c0_1 = arith.constant 0 : index
    %0 = vector.load %arg3[%c0, %c0_0, %c0_1] : memref<1x8x256xbf16, #tpu.memory_space<vmem>>, vector<1x8x256xbf16>
    %1 = vector.shape_cast %0 : vector<1x8x256xbf16> to vector<8x256xbf16>
    %c0_2 = arith.constant 0 : index
    %c0_3 = arith.constant 0 : index
    %c0_4 = arith.constant 0 : index
    %2 = vector.load %arg4[%c0_2, %c0_3, %c0_4] : memref<1x8x256xbf16, #tpu.memory_space<vmem>>, vector<1x8x256xbf16>
    %3 = vector.shape_cast %2 : vector<1x8x256xbf16> to vector<8x256xbf16>
    %4 = tpu.concatenate %1, %3 in 1 : vector<8x256xbf16>, vector<8x256xbf16> -> vector<8x512xbf16>
    %5 = vector.extract_strided_slice %4 {offsets = [0, 0], sizes = [8, 256], strides = [1, 1]} : vector<8x512xbf16> to vector<8x256xbf16>
    %6 = vector.extract_strided_slice %4 {offsets = [0, 1], sizes = [8, 256], strides = [1, 1]} : vector<8x512xbf16> to vector<8x256xbf16>
    %7 = vector.extract_strided_slice %4 {offsets = [0, 2], sizes = [8, 256], strides = [1, 1]} : vector<8x512xbf16> to vector<8x256xbf16>
    %8 = vector.extract_strided_slice %4 {offsets = [0, 16], sizes = [8, 256], strides = [1, 1]} : vector<8x512xbf16> to vector<8x256xbf16>
    %9 = vector.extract_strided_slice %4 {offsets = [0, 17], sizes = [8, 256], strides = [1, 1]} : vector<8x512xbf16> to vector<8x256xbf16>
    %10 = vector.extract_strided_slice %4 {offsets = [0, 18], sizes = [8, 256], strides = [1, 1]} : vector<8x512xbf16> to vector<8x256xbf16>
    %11 = vector.extract_strided_slice %4 {offsets = [0, 32], sizes = [8, 256], strides = [1, 1]} : vector<8x512xbf16> to vector<8x256xbf16>
    %12 = vector.extract_strided_slice %4 {offsets = [0, 33], sizes = [8, 256], strides = [1, 1]} : vector<8x512xbf16> to vector<8x256xbf16>
    %13 = vector.extract_strided_slice %4 {offsets = [0, 34], sizes = [8, 256], strides = [1, 1]} : vector<8x512xbf16> to vector<8x256xbf16>
    %14 = tpu.concatenate %5, %6, %7, %8, %9, %10, %11, %12, %13 in 0 : vector<8x256xbf16>, vector<8x256xbf16>, vector<8x256xbf16>, vector<8x256xbf16>, vector<8x256xbf16>, vector<8x256xbf16>, vector<8x256xbf16>, vector<8x256xbf16>, vector<8x256xbf16> -> vector<72x256xbf16>
    %c0_5 = arith.constant 0 : index
    %c0_6 = arith.constant 0 : index
    %15 = vector.load %arg2[%c0_5, %c0_6] : memref<8x72xbf16, #tpu.memory_space<vmem>>, vector<8x72xbf16>
    %c0_7 = arith.constant 0 : index
    %c0_8 = arith.constant 0 : index
    %16 = vector.load %arg5[%c0_7, %c0_8] : memref<1x256xf32, #tpu.memory_space<vmem>>, vector<1x256xf32>
    %cst = arith.constant dense<0.000000e+00> : vector<8x256xf32>
    %17 = tpu.matmul %15, %14, %cst {dimension_numbers = #tpu.dot_dimension_numbers<[1], [0], [0], [1], [0, 0, 1, 1], [], []>} : vector<8x72xbf16>, vector<72x256xbf16>, vector<8x256xf32> -> vector<8x256xf32>
    %cst_9 = arith.constant 0.000000e+00 : f32
    %18 = vector.broadcast %cst_9 : f32 to vector<8x256xf32>
    %19 = arith.maximumf %17, %18 : vector<8x256xf32>
    %20 = arith.truncf %19 : vector<8x256xf32> to vector<8x256xbf16>
    %21 = vector.shape_cast %20 : vector<8x256xbf16> to vector<1x8x256xbf16>
    %c0_10 = arith.constant 0 : index
    %c0_11 = arith.constant 0 : index
    %c0_12 = arith.constant 0 : index
    %22 = vector.load %arg6[%c0_10, %c0_11, %c0_12] : memref<1x8x256xbf16, #tpu.memory_space<vmem>>, vector<1x8x256xbf16>
    tpu.vector_store %arg6[%c0_10, %c0_11, %c0_12], %21 {strides = array<i32>} : memref<1x8x256xbf16, #tpu.memory_space<vmem>>, vector<1x8x256xbf16>,
    %23 = vector.broadcast %16 : vector<1x256xf32> to vector<8x256xf32>
    %24 = arith.mulf %19, %23 : vector<8x256xf32>
    %cst_13 = arith.constant dense<0.000000e+00> : vector<8xf32>
    %25 = vector.multi_reduction <add>, %24, %cst_13 [1] : vector<8x256xf32> to vector<8xf32>
    %26 = vector.shape_cast %25 : vector<8xf32> to vector<8x1xf32>
    %27 = arith.mulf %24, %24 : vector<8x256xf32>
    %cst_14 = arith.constant dense<0.000000e+00> : vector<8xf32>
    %28 = vector.multi_reduction <add>, %27, %cst_14 [1] : vector<8x256xf32> to vector<8xf32>
    %29 = vector.shape_cast %28 : vector<8xf32> to vector<8x1xf32>
    %30 = tpu.concatenate %26, %29 in 1 : vector<8x1xf32>, vector<8x1xf32> -> vector<8x2xf32>
    %31 = tpu.transpose %30, [1, 0] : vector<8x2xf32> -> vector<2x8xf32>
    %32 = vector.shape_cast %31 : vector<2x8xf32> to vector<1x1x2x8xf32>
    %c0_15 = arith.constant 0 : index
    %c0_16 = arith.constant 0 : index
    %c0_17 = arith.constant 0 : index
    %c0_18 = arith.constant 0 : index
    %33 = vector.load %arg7[%c0_15, %c0_16, %c0_17, %c0_18] : memref<1x1x2x8xf32, #tpu.memory_space<vmem>>, vector<1x1x2x8xf32>
    tpu.vector_store %arg7[%c0_15, %c0_16, %c0_17, %c0_18], %32 {strides = array<i32>} : memref<1x1x2x8xf32, #tpu.memory_space<vmem>>, vector<1x1x2x8xf32>,
    return
  }
  func.func @transform_0(%arg0: i32, %arg1: i32) -> (i32, i32) {
    %c0_i32 = arith.constant 0 : i32
    %c0_i32_0 = arith.constant 0 : i32
    %c0_i32_1 = arith.constant 0 : i32
    return %c0_i32, %c0_i32_0 : i32, i32
  }
  func.func @transform_1(%arg0: i32, %arg1: i32) -> (i32, i32, i32) {
    %c0_i32 = arith.constant 0 : i32
    %c0_i32_0 = arith.constant 0 : i32
    return %arg0, %c0_i32, %arg1 : i32, i32, i32
  }
  func.func @transform_2(%arg0: i32, %arg1: i32) -> (i32, i32, i32) {
    %c1_i32 = arith.constant 1 : i32
    %0 = arith.addi %arg1, %c1_i32 : i32
    %c0_i32 = arith.constant 0 : i32
    %c0_i32_0 = arith.constant 0 : i32
    return %arg0, %c0_i32, %0 : i32, i32, i32
  }
  func.func @transform_3(%arg0: i32, %arg1: i32) -> (i32, i32) {
    %c0_i32 = arith.constant 0 : i32
    %c0_i32_0 = arith.constant 0 : i32
    return %c0_i32, %arg1 : i32, i32
  }
  func.func @transform_4(%arg0: i32, %arg1: i32) -> (i32, i32, i32) {
    %c0_i32 = arith.constant 0 : i32
    %c0_i32_0 = arith.constant 0 : i32
    return %arg0, %c0_i32, %arg1 : i32, i32, i32
  }
  func.func @transform_5(%arg0: i32, %arg1: i32) -> (i32, i32, i32, i32) {
    %c0_i32 = arith.constant 0 : i32
    %c0_i32_0 = arith.constant 0 : i32
    %c0_i32_1 = arith.constant 0 : i32
    return %arg0, %arg1, %c0_i32, %c0_i32_0 : i32, i32, i32, i32
  }
}

module attributes {stable_mosaic.version = 11 : i64} {
  func.func @_bn_apply_kernel(%arg0: i32, %arg1: i32, %arg2: memref<8x1xf32, #tpu.memory_space<vmem>>, %arg3: memref<8x1xf32, #tpu.memory_space<vmem>>, %arg4: memref<1x8x256xbf16, #tpu.memory_space<vmem>>, %arg5: memref<1x8x256xbf16, #tpu.memory_space<vmem>>) attributes {dimension_semantics = [#tpu.dimension_semantics<parallel>, #tpu.dimension_semantics<parallel>], iteration_bounds = array<i64: 2, 1>, scalar_prefetch = 0 : i64, scratch_operands = 0 : i64, tpu.core_type = #tpu.core_type<tc>, window_params = [{pipeline_mode = #tpu.pipeline_mode<synchronous>, transform_indices = @transform_0, window_bounds = array<i64: 8, 1>}, {pipeline_mode = #tpu.pipeline_mode<synchronous>, transform_indices = @transform_1, window_bounds = array<i64: 8, 1>}, {transform_indices = @transform_2, window_bounds = array<i64: 1, 8, 256>}, {transform_indices = @transform_3, window_bounds = array<i64: 1, 8, 256>}]} {
    %c0 = arith.constant 0 : index
    %c0_0 = arith.constant 0 : index
    %c0_1 = arith.constant 0 : index
    %0 = vector.load %arg4[%c0, %c0_0, %c0_1] : memref<1x8x256xbf16, #tpu.memory_space<vmem>>, vector<1x8x256xbf16>
    %1 = arith.extf %0 : vector<1x8x256xbf16> to vector<1x8x256xf32>
    %c0_2 = arith.constant 0 : index
    %c0_3 = arith.constant 0 : index
    %2 = vector.load %arg2[%c0_2, %c0_3] : memref<8x1xf32, #tpu.memory_space<vmem>>, vector<8x1xf32>
    %3 = vector.shape_cast %2 : vector<8x1xf32> to vector<1x8x1xf32>
    %4 = vector.broadcast %3 : vector<1x8x1xf32> to vector<1x8x256xf32>
    %5 = arith.mulf %1, %4 : vector<1x8x256xf32>
    %c0_4 = arith.constant 0 : index
    %c0_5 = arith.constant 0 : index
    %6 = vector.load %arg3[%c0_4, %c0_5] : memref<8x1xf32, #tpu.memory_space<vmem>>, vector<8x1xf32>
    %7 = vector.shape_cast %6 : vector<8x1xf32> to vector<1x8x1xf32>
    %8 = vector.broadcast %7 : vector<1x8x1xf32> to vector<1x8x256xf32>
    %9 = arith.addf %5, %8 : vector<1x8x256xf32>
    %10 = arith.truncf %9 : vector<1x8x256xf32> to vector<1x8x256xbf16>
    %c0_6 = arith.constant 0 : index
    %c0_7 = arith.constant 0 : index
    %c0_8 = arith.constant 0 : index
    %11 = vector.load %arg5[%c0_6, %c0_7, %c0_8] : memref<1x8x256xbf16, #tpu.memory_space<vmem>>, vector<1x8x256xbf16>
    tpu.vector_store %arg5[%c0_6, %c0_7, %c0_8], %10 {strides = array<i32>} : memref<1x8x256xbf16, #tpu.memory_space<vmem>>, vector<1x8x256xbf16>,
    return
  }
  func.func @transform_0(%arg0: i32, %arg1: i32) -> (i32, i32) {
    %c0_i32 = arith.constant 0 : i32
    %c0_i32_0 = arith.constant 0 : i32
    %c0_i32_1 = arith.constant 0 : i32
    return %c0_i32, %c0_i32_0 : i32, i32
  }
  func.func @transform_1(%arg0: i32, %arg1: i32) -> (i32, i32) {
    %c0_i32 = arith.constant 0 : i32
    %c0_i32_0 = arith.constant 0 : i32
    %c0_i32_1 = arith.constant 0 : i32
    return %c0_i32, %c0_i32_0 : i32, i32
  }
  func.func @transform_2(%arg0: i32, %arg1: i32) -> (i32, i32, i32) {
    %c0_i32 = arith.constant 0 : i32
    %c0_i32_0 = arith.constant 0 : i32
    return %arg0, %c0_i32, %arg1 : i32, i32, i32
  }
  func.func @transform_3(%arg0: i32, %arg1: i32) -> (i32, i32, i32) {
    %c0_i32 = arith.constant 0 : i32
    %c0_i32_0 = arith.constant 0 : i32
    return %arg0, %c0_i32, %arg1 : i32, i32, i32
  }
}

</mosaic_0001>

<llo_original>
// kernel: conv_block_forward.2
$region0: #{conv_block_forward.2}
  #allocation0 [shape = 'u32[]', space=smem, size = 0x4, offset = 0x4, fixed_abs, tag = 'smem constant byte address 0x4 - core index']
  #allocation1 [shape = 'u32[144,128]{1,0:T(1,128)}', space=vmem, size = 0x12000, scoped, tag = 'internal scratch']
  %s0 = inlined_call_operand.vmem [shape: bf16[8,72], index: 0, kind: input, shape index: {}]
  %s1 = inlined_call_operand.vmem [shape: bf16[2,8,512], index: 1, kind: input, shape index: {}, may-alias: {1,2}]
  %s2 = inlined_call_operand.vmem [shape: bf16[2,8,512], index: 2, kind: input, shape index: {}, may-alias: {1,2}]
  %s3 = inlined_call_operand.vmem [shape: f32[1,256], index: 3, kind: input, shape index: {}]
  %s4 = inlined_call_operand.vmem [shape: bf16[2,8,256], index: 4, kind: output, shape index: {0}]
  %s5 = inlined_call_operand.vmem [shape: f32[2,1,2,8], index: 5, kind: output, shape index: {1}]
  %6 = xla_tuple %s4, %s5
  %s7 = sld [smem:[#allocation0]]
  $region57: #{conv_block_forward.2} parent=0
    _
  %s9 = ssub.s32 1, %s7
  %s10 = scalar_select 0, %s9, %s7
  loop: start=0, step=1, limit=4
  $region2: #{conv_block_forward.2} parent=0 // loop_pre_header
    _
  $region3: #{conv_block_forward.2} parent=0 // loop_header
    %s12 = sphi 0, %s16
    %p13 = scmp.ge.s32.totalorder %s12, 4
    %s19 = sphi 0, %s31
    %s20 = sphi 0, %s27
    %s21 = sphi 0, %s19
    %s22 = sphi 0, %s20
    %s23 = sphi 0, %s21
    %s24 = sphi 0, %s22
    %s32 = sphi 0, %s32
    %s34 = sphi 0, %s32
    %s35 = sphi 0, %s34
    %s49 = sphi 0, %s35
    %s57 = sphi 0, %s59
    %s60 = sphi 0, %s57
    %s61 = sphi 0, %s60
    %s77 = sphi 0, %s61
    %s87 = sphi 0, %s89
    %s90 = sphi 0, %s87
    %s91 = sphi 0, %s90
    %s107 = sphi 0, %s91
    %s113 = sphi 0, %s115
    %s116 = sphi 0, %s113
    %s117 = sphi 0, %s116
    %s133 = sphi 0, %s117
    %s141 = sphi 0, %s143
    %s144 = sphi 0, %s141
    %s145 = sphi 0, %s144
    %s161 = sphi 0, %s145
    %s169 = sphi 0, %s171
    %s172 = sphi 0, %s169
    %s173 = sphi 0, %s172
    %s189 = sphi 0, %s173
  $region4: #{conv_block_forward.2} parent=0 // loop_header_branch
    %15 = sbr.rel (%p13) target = $region8
  $region5: #{conv_block_forward.2} parent=0 // loop_body
    %s17 = ssub.s32 %s12, 1
    %s18 = ssub.s32 %s12, 2
    %s25 = sadd.s32 1, %s20
    %p26 = scmp.ge.s32.totalorder %s25, 1
    %s27 = scalar_select %p26, 0, %s25
    %s28 = sadd.s32 1, %s19
    %s29 = scalar_select %p26, %s28, %s19
    %p30 = scmp.ge.s32.totalorder %s29, 2
    %s31 = scalar_select %p30, 0, %s29
    %s33 = sadd.s32 %s32, 1
    %p36 = scmp.eq.s32.totalorder %s12, 1
    %p37 = scmp.ne.s32.totalorder %s32, %s34
    %p38 = scmp.eq.s32.totalorder %s12, 0
    %p39 = por %p37, %p38
    %p40 = scmp.ne.s32.totalorder %s32, %s34
    %p41 = scmp.eq.s32.totalorder %s17, 1
    %p42 = por %p40, %p41
    %p43 = scmp.ne.s32.totalorder %s34, %s35
    %p44 = scmp.eq.s32.totalorder %s17, 0
    %p45 = por %p43, %p44
    %p46 = scmp.ne.s32.totalorder %s34, %s35
    %p47 = scmp.eq.s32.totalorder %s18, 1
    %p48 = por %p46, %p47
    %p50 = scmp.ne.s32.totalorder %s35, %s49
    %p51 = scmp.eq.s32.totalorder %s18, 0
    %p52 = por %p50, %p51
    %s53 = ssub.s32 %s19, %s31
    %s54 = ssub.s32 %s20, %s27
    %s55 = sor.u32 %s53, %s54
    %p56 = scmp.eq.s32.totalorder %s55, 0
    %s58 = sadd.s32 %s57, 1
    %s59 = scalar_select %p56, %s57, %s58
    %p62 = pneg %p56
    %p63 = scmp.eq.s32.totalorder %s12, 1
    %p64 = por %p62, %p63
    %p65 = scmp.ne.s32.totalorder %s57, %s60
    %p66 = scmp.eq.s32.totalorder %s12, 0
    %p67 = por %p65, %p66
    %p68 = scmp.ne.s32.totalorder %s57, %s60
    %p69 = scmp.eq.s32.totalorder %s17, 1
    %p70 = por %p68, %p69
    %p71 = scmp.ne.s32.totalorder %s60, %s61
    %p72 = scmp.eq.s32.totalorder %s17, 0
    %p73 = por %p71, %p72
    %p74 = scmp.ne.s32.totalorder %s60, %s61
    %p75 = scmp.eq.s32.totalorder %s18, 1
    %p76 = por %p74, %p75
    %p78 = scmp.ne.s32.totalorder %s61, %s77
    %p79 = scmp.eq.s32.totalorder %s18, 0
    %p80 = por %p78, %p79
    %s81 = sadd.s32 %s20, 1
    %s82 = sadd.s32 %s27, 1
    %s83 = ssub.s32 %s19, %s31
    %s84 = ssub.s32 %s81, %s82
    %s85 = sor.u32 %s83, %s84
    %p86 = scmp.eq.s32.totalorder %s85, 0
    %s88 = sadd.s32 %s87, 1
    %s89 = scalar_select %p86, %s87, %s88
    %p92 = pneg %p86
    %p93 = scmp.eq.s32.totalorder %s12, 1
    %p94 = por %p92, %p93
    %p95 = scmp.ne.s32.totalorder %s87, %s90
    %p96 = scmp.eq.s32.totalorder %s12, 0
    %p97 = por %p95, %p96
    %p98 = scmp.ne.s32.totalorder %s87, %s90
    %p99 = scmp.eq.s32.totalorder %s17, 1
    %p100 = por %p98, %p99
    %p101 = scmp.ne.s32.totalorder %s90, %s91
    %p102 = scmp.eq.s32.totalorder %s17, 0
    %p103 = por %p101, %p102
    %p104 = scmp.ne.s32.totalorder %s90, %s91
    %p105 = scmp.eq.s32.totalorder %s18, 1
    %p106 = por %p104, %p105
    %p108 = scmp.ne.s32.totalorder %s91, %s107
    %p109 = scmp.eq.s32.totalorder %s18, 0
    %p110 = por %p108, %p109
    %s111 = ssub.s32 %s20, %s27
    %p112 = scmp.eq.s32.totalorder %s111, 0
    %s114 = sadd.s32 %s113, 1
    %s115 = scalar_select %p112, %s113, %s114
    %p118 = pneg %p112
    %p119 = scmp.eq.s32.totalorder %s12, 1
    %p120 = por %p118, %p119
    %p121 = scmp.ne.s32.totalorder %s113, %s116
    %p122 = scmp.eq.s32.totalorder %s12, 0
    %p123 = por %p121, %p122
    %p124 = scmp.ne.s32.totalorder %s113, %s116
    %p125 = scmp.eq.s32.totalorder %s17, 1
    %p126 = por %p124, %p125
    %p127 = scmp.ne.s32.totalorder %s116, %s117
    %p128 = scmp.eq.s32.totalorder %s17, 0
    %p129 = por %p127, %p128
    %p130 = scmp.ne.s32.totalorder %s116, %s117
    %p131 = scmp.eq.s32.totalorder %s18, 1
    %p132 = por %p130, %p131
    %p134 = scmp.ne.s32.totalorder %s117, %s133
    %p135 = scmp.eq.s32.totalorder %s18, 0
    %p136 = por %p134, %p135
    %s137 = ssub.s32 %s19, %s31
    %s138 = ssub.s32 %s20, %s27
    %s139 = sor.u32 %s137, %s138
    %p140 = scmp.eq.s32.totalorder %s139, 0
    %s142 = sadd.s32 %s141, 1
    %s143 = scalar_select %p140, %s141, %s142
    %p146 = pneg %p140
    %p147 = scmp.eq.s32.totalorder %s12, 1
    %p148 = por %p146, %p147
    %p149 = scmp.ne.s32.totalorder %s141, %s144
    %p150 = scmp.eq.s32.totalorder %s12, 0
    %p151 = por %p149, %p150
    %p152 = scmp.ne.s32.totalorder %s141, %s144
    %p153 = scmp.eq.s32.totalorder %s17, 1
    %p154 = por %p152, %p153
    %p155 = scmp.ne.s32.totalorder %s144, %s145
    %p156 = scmp.eq.s32.totalorder %s17, 0
    %p157 = por %p155, %p156
    %p158 = scmp.ne.s32.totalorder %s144, %s145
    %p159 = scmp.eq.s32.totalorder %s18, 1
    %p160 = por %p158, %p159
    %p162 = scmp.ne.s32.totalorder %s145, %s161
    %p163 = scmp.eq.s32.totalorder %s18, 0
    %p164 = por %p162, %p163
    %s165 = ssub.s32 %s19, %s31
    %s166 = ssub.s32 %s20, %s27
    %s167 = sor.u32 %s165, %s166
    %p168 = scmp.eq.s32.totalorder %s167, 0
    %s170 = sadd.s32 %s169, 1
    %s171 = scalar_select %p168, %s169, %s170
    %p174 = pneg %p168
    %p175 = scmp.eq.s32.totalorder %s12, 1
    %p176 = por %p174, %p175
    %p177 = scmp.ne.s32.totalorder %s169, %s172
    %p178 = scmp.eq.s32.totalorder %s12, 0
    %p179 = por %p177, %p178
    %p180 = scmp.ne.s32.totalorder %s169, %s172
    %p181 = scmp.eq.s32.totalorder %s17, 1
    %p182 = por %p180, %p181
    %p183 = scmp.ne.s32.totalorder %s172, %s173
    %p184 = scmp.eq.s32.totalorder %s17, 0
    %p185 = por %p183, %p184
    %p186 = scmp.ne.s32.totalorder %s172, %s173
    %p187 = scmp.eq.s32.totalorder %s18, 1
    %p188 = por %p186, %p187
    %p190 = scmp.ne.s32.totalorder %s173, %s189
    %p191 = scmp.eq.s32.totalorder %s18, 0
    %p192 = por %p190, %p191
    %p193 = scmp.le.s32.totalorder 1, %s12
    %p194 = scmp.lt.s32.totalorder %s12, 3
    %p195 = pnand %p193, %p194
    %p196 = pneg %p195
    // Predicated region
    $region9: #{conv_block_forward.2} parent=5 // pred_check
      _
    $region10: #{conv_block_forward.2} parent=5 // pred_check_branch
      %198 = sbr.rel (%p195) target = $region12
    $region11: #{conv_block_forward.2} parent=5 // pred_region
      %s199 = ssub.s32 %s12, 1
      // Predicated region
      $region13: #{conv_block_forward.2} parent=11 // pred_check
        %p200 = pneg %p45
      $region14: #{conv_block_forward.2} parent=11 // pred_check_branch
        %202 = sbr.rel (%p200) target = $region16
      $region15: #{conv_block_forward.2} parent=11 // pred_region
        _
      $region16: #{conv_block_forward.2} parent=11 // pred_fallthru
        _
      // Predicated region
      $region17: #{conv_block_forward.2} parent=11 // pred_check
        %p203 = pneg %p129
      $region18: #{conv_block_forward.2} parent=11 // pred_check_branch
        %205 = sbr.rel (%p203) target = $region20
      $region19: #{conv_block_forward.2} parent=11 // pred_region
        %s206 = smul.u32 2, %s22
        %p207 = scmp.lt.s32.totalorder %s206, 1
        %s208 = scalar_select %p207, %s206, 1
        %s209 = scalar_lea.vmem %s3, %s208
        %s210 = smul.u32 2, %s22
      $region20: #{conv_block_forward.2} parent=11 // pred_fallthru
        _
    $region12: #{conv_block_forward.2} parent=5 // pred_fallthru
      _
    %p211 = scmp.lt.s32.totalorder %s12, 2
    // Predicated region
    $region21: #{conv_block_forward.2} parent=5 // pred_check
      %p212 = pneg %p211
    $region22: #{conv_block_forward.2} parent=5 // pred_check_branch
      %214 = sbr.rel (%p212) target = $region24
    $region23: #{conv_block_forward.2} parent=5 // pred_region
      // Predicated region
      $region25: #{conv_block_forward.2} parent=23 // pred_check
        %p215 = pneg %p67
      $region26: #{conv_block_forward.2} parent=23 // pred_check_branch
        %217 = sbr.rel (%p215) target = $region28
      $region27: #{conv_block_forward.2} parent=23 // pred_region
        %s218 = smul.u32 2, %s20
        %p219 = scmp.lt.s32.totalorder %s19, 1
        %s220 = scalar_select %p219, %s19, 1
        %p221 = scmp.lt.s32.totalorder %s218, 3
        %s222 = scalar_select %p221, %s218, 3
        %s223 = smul.addr %s220, 4
        %s224 = sadd.s32 %s222, %s223
        %s225 = smul.addr %s224, 4
        %s226 = scalar_lea.vmem %s1, %s225
        %s227 = smul.u32 2, %s20
      $region28: #{conv_block_forward.2} parent=23 // pred_fallthru
        _
      // Predicated region
      $region29: #{conv_block_forward.2} parent=23 // pred_check
        %p228 = pneg %p97
      $region30: #{conv_block_forward.2} parent=23 // pred_check_branch
        %230 = sbr.rel (%p228) target = $region32
      $region31: #{conv_block_forward.2} parent=23 // pred_region
        %s231 = sadd.s32 %s20, 1
        %s232 = smul.u32 2, %s231
        %p233 = scmp.lt.s32.totalorder %s19, 1
        %s234 = scalar_select %p233, %s19, 1
        %p235 = scmp.lt.s32.totalorder %s232, 3
        %s236 = scalar_select %p235, %s232, 3
        %s237 = smul.addr %s234, 4
        %s238 = sadd.s32 %s236, %s237
        %s239 = smul.addr %s238, 4
        %s240 = scalar_lea.vmem %s2, %s239
        %s241 = sadd.s32 %s20, 1
        %s242 = smul.u32 2, %s241
      $region32: #{conv_block_forward.2} parent=23 // pred_fallthru
        _
    $region24: #{conv_block_forward.2} parent=5 // pred_fallthru
      _
    %p243 = scmp.le.s32.totalorder 1, %s12
    %p244 = scmp.lt.s32.totalorder %s12, 3
    %p245 = pnand %p243, %p244
    %p246 = pneg %p245
    // Predicated region
    $region33: #{conv_block_forward.2} parent=5 // pred_check
      _
    $region34: #{conv_block_forward.2} parent=5 // pred_check_branch
      %248 = sbr.rel (%p245) target = $region36
    $region35: #{conv_block_forward.2} parent=5 // pred_region
      %s249 = ssub.s32 %s12, 1
      %p250 = pneg %p45
      %p251 = pneg %p42
      %s252 = smul.u32 2, %s22
      %p253 = scmp.lt.s32.totalorder %s21, 1
      %s254 = scalar_select %p253, %s21, 1
      %p255 = scmp.lt.s32.totalorder %s252, 3
      %s256 = scalar_select %p255, %s252, 3
      %s257 = smul.addr %s254, 4
      %s258 = sadd.s32 %s256, %s257
      %s259 = smul.addr %s258, 4
      %s260 = scalar_lea.vmem %s1, %s259
      %p261 = pneg %p73
      %p262 = pneg %p70
      %s263 = sadd.s32 %s22, 1
      %s264 = smul.u32 2, %s263
      %p265 = scmp.lt.s32.totalorder %s21, 1
      %s266 = scalar_select %p265, %s21, 1
      %p267 = scmp.lt.s32.totalorder %s264, 3
      %s268 = scalar_select %p267, %s264, 3
      %s269 = smul.addr %s266, 4
      %s270 = sadd.s32 %s268, %s269
      %s271 = smul.addr %s270, 4
      %s272 = scalar_lea.vmem %s2, %s271
      %p273 = pneg %p103
      %p274 = pneg %p100
      %s275 = smul.u32 2, %s22
      %p276 = scmp.lt.s32.totalorder %s275, 1
      %s277 = scalar_select %p276, %s275, 1
      %s278 = scalar_lea.vmem %s3, %s277
      %p279 = pneg %p129
      %p280 = pneg %p126
      %p281 = pneg %p157
      %p282 = pneg %p154
      %s283 = smul.u32 2, %s22
      %p284 = scmp.lt.s32.totalorder %s21, 1
      %s285 = scalar_select %p284, %s21, 1
      %p286 = scmp.lt.s32.totalorder %s283, 1
      %s287 = scalar_select %p286, %s283, 1
      %s288 = smul.addr %s285, 2
      %s289 = sadd.s32 %s287, %s288
      %s290 = smul.addr %s289, 4
      %s291 = scalar_lea.vmem %s4, %s290
      %p292 = pneg %p185
      %p293 = pneg %p182
      %p294 = scmp.lt.s32.totalorder %s21, 1
      %s295 = scalar_select %p294, %s21, 1
      %p296 = scmp.lt.s32.totalorder %s22, 0
      %s297 = scalar_select %p296, %s22, 0
      %s298 = sadd.s32 %s297, %s295
      %s299 = smul.addr %s298, 2
      %s300 = scalar_lea.vmem %s5, %s299
      %s301 = smul.u32 2, %s22
      %p302 = scmp.lt.s32.totalorder %s21, 1
      %s303 = scalar_select %p302, %s21, 1
      %p304 = scmp.lt.s32.totalorder %s301, 3
      %s305 = scalar_select %p304, %s301, 3
      %s306 = smul.addr %s303, 4
      %s307 = sadd.s32 %s305, %s306
      %s308 = smul.addr %s307, 4
      %s309 = scalar_lea.vmem %s1, %s308
      %s310 = smul.u32 2, %s22
      %s311 = sadd.s32 %s22, 1
      %s312 = smul.u32 2, %s311
      %p313 = scmp.lt.s32.totalorder %s21, 1
      %s314 = scalar_select %p313, %s21, 1
      %p315 = scmp.lt.s32.totalorder %s312, 3
      %s316 = scalar_select %p315, %s312, 3
      %s317 = smul.addr %s314, 4
      %s318 = sadd.s32 %s316, %s317
      %s319 = smul.addr %s318, 4
      %s320 = scalar_lea.vmem %s2, %s319
      %s321 = sadd.s32 %s22, 1
      %s322 = smul.u32 2, %s321
      %s323 = smul.u32 2, %s22
      %p324 = scmp.lt.s32.totalorder %s323, 1
      %s325 = scalar_select %p324, %s323, 1
      %s326 = scalar_lea.vmem %s3, %s325
      %s327 = smul.u32 2, %s22
      %s328 = smul.u32 2, %s22
      %p329 = scmp.lt.s32.totalorder %s21, 1
      %s330 = scalar_select %p329, %s21, 1
      %p331 = scmp.lt.s32.totalorder %s328, 1
      %s332 = scalar_select %p331, %s328, 1
      %s333 = smul.addr %s330, 2
      %s334 = sadd.s32 %s332, %s333
      %s335 = smul.addr %s334, 4
      %s336 = scalar_lea.vmem %s4, %s335
      %s337 = smul.u32 2, %s22
      %p338 = scmp.lt.s32.totalorder %s21, 1
      %s339 = scalar_select %p338, %s21, 1
      %p340 = scmp.lt.s32.totalorder %s22, 0
      %s341 = scalar_select %p340, %s22, 0
      %s342 = sadd.s32 %s341, %s339
      %s343 = smul.addr %s342, 2
      %s344 = scalar_lea.vmem %s5, %s343
      %v346 = vld [vmem:[%s309] sm:$0xff]
      %v347 = vld [vmem:[%s320] sm:$0xff]
      %v349 = vunpack.c.l.b16 %v346
      %v350 = vunpack.c.h.b16 %v346
      %v351 = vpack.c.b16 %v349, %v349
      %v352 = vpack.c.b16 %v350, %v350
      %v354 = vunpack.c.l.b16 %v347
      %v355 = vpack.c.b16 %v354, %v354
      %v356 = vrot.slane %v351, 4
      %v357 = vrot.slane %v352, 4
      %v358 = vrot.slane %v355, 4
      %359 = vrot.lane.b32.xlu0 %v356, 127
      %v360 = vpop.permute.xlu0 %359
      %361 = vrot.lane.b32.xlu0 %v357, 127
      %v362 = vpop.permute.xlu0 %361
      %363 = vrot.lane.b32.xlu0 %v358, 127
      %v364 = vpop.permute.xlu0 %363
      %vm365 = vcmask 1039360
      %v366 = vsel %vm365, %v360, %v362
      %v367 = vsel %vm365, %v362, %v364
      %368 = vrot.lane.b32.xlu0 %v351, 126
      %v369 = vpop.permute.xlu0 %368
      %370 = vrot.lane.b32.xlu0 %v352, 126
      %v371 = vpop.permute.xlu0 %370
      %372 = vrot.lane.b32.xlu0 %v355, 126
      %v373 = vpop.permute.xlu0 %372
      %vm374 = vcmask 1031168
      %v375 = vsel %vm374, %v369, %v371
      %v376 = vsel %vm374, %v371, %v373
      %377 = vrot.lane.b32.xlu0 %v356, 112
      %v378 = vpop.permute.xlu0 %377
      %379 = vrot.lane.b32.xlu0 %v357, 112
      %v380 = vpop.permute.xlu0 %379
      %381 = vrot.lane.b32.xlu0 %v358, 112
      %v382 = vpop.permute.xlu0 %381
      %vm383 = vcmask 916480
      %v384 = vsel %vm383, %v378, %v380
      %v385 = vsel %vm383, %v380, %v382
      %386 = vrot.lane.b32.xlu0 %v351, 111
      %v387 = vpop.permute.xlu0 %386
      %388 = vrot.lane.b32.xlu0 %v352, 111
      %v389 = vpop.permute.xlu0 %388
      %390 = vrot.lane.b32.xlu0 %v355, 111
      %v391 = vpop.permute.xlu0 %390
      %vm392 = vcmask 908288
      %v393 = vsel %vm392, %v387, %v389
      %v394 = vsel %vm392, %v389, %v391
      %395 = vrot.lane.b32.xlu0 %v356, 110
      %v396 = vpop.permute.xlu0 %395
      %397 = vrot.lane.b32.xlu0 %v357, 110
      %v398 = vpop.permute.xlu0 %397
      %399 = vrot.lane.b32.xlu0 %v358, 110
      %v400 = vpop.permute.xlu0 %399
      %vm401 = vcmask 900096
      %v402 = vsel %vm401, %v396, %v398
      %v403 = vsel %vm401, %v398, %v400
      %404 = vrot.lane.b32.xlu0 %v351, 96
      %v405 = vpop.permute.xlu0 %404
      %406 = vrot.lane.b32.xlu0 %v352, 96
      %v407 = vpop.permute.xlu0 %406
      %408 = vrot.lane.b32.xlu0 %v355, 96
      %v409 = vpop.permute.xlu0 %408
      %vm410 = vcmask 785408
      %v411 = vsel %vm410, %v405, %v407
      %v412 = vsel %vm410, %v407, %v409
      %413 = vrot.lane.b32.xlu0 %v356, 95
      %v414 = vpop.permute.xlu0 %413
      %415 = vrot.lane.b32.xlu0 %v357, 95
      %v416 = vpop.permute.xlu0 %415
      %417 = vrot.lane.b32.xlu0 %v358, 95
      %v418 = vpop.permute.xlu0 %417
      %vm419 = vcmask 777216
      %v420 = vsel %vm419, %v414, %v416
      %v421 = vsel %vm419, %v416, %v418
      %422 = vrot.lane.b32.xlu0 %v351, 94
      %v423 = vpop.permute.xlu0 %422
      %424 = vrot.lane.b32.xlu0 %v352, 94
      %v425 = vpop.permute.xlu0 %424
      %426 = vrot.lane.b32.xlu0 %v355, 94
      %v427 = vpop.permute.xlu0 %426
      %vm428 = vcmask 769024
      %v429 = vsel %vm428, %v423, %v425
      %v430 = vsel %vm428, %v425, %v427
      %vm431 = vcmask 1043456
      %v434 = vsel %vm431, %v351, %v366
      %v438 = vsel %vm431, %v352, %v367
      %v442 = vsel %vm431, %v375, %v384
      %v446 = vsel %vm431, %v376, %v385
      %v450 = vsel %vm431, %v393, %v402
      %v454 = vsel %vm431, %v394, %v403
      %v458 = vsel %vm431, %v411, %v420
      %v462 = vsel %vm431, %v412, %v421
      %v464 = vld [vmem:[%s0] sm:$0xf]
      %v465 = vld [vmem:[%s326] sm:$0x3]
      %vm466 = vcmask 588800
      %v468 = vsel %vm466, %v464, 0
      %v471 = vsel %vm431, %v429, 0
      %v474 = vsel %vm431, %v430, 0
      %476 = vmatprep.subr.bf16.mxu0 0
      %477 = vmatpush1.bf16.msra.mxu0 0
      %478 = vmatprep.subr.bf16.mxu0 0
      %479 = vmatpush1.bf16.msra.mxu0 0
      %480 = vmatprep.subr.bf16.mxu0 0
      %481 = vmatpush1.bf16.msra.mxu0 0
      %482 = vmatprep.subr.bf16.mxu0 %v474
      %483 = vmatpush1.bf16.msra.mxu0 %v471
      %484 = vmatprep.subr.bf16.mxu0 %v462
      %485 = vmatpush1.bf16.msra.mxu0 %v458
      %486 = vmatprep.subr.bf16.mxu0 %v454
      %487 = vmatpush1.bf16.msra.mxu0 %v450
      %488 = vmatprep.subr.bf16.mxu0 %v446
      %489 = vmatpush1.bf16.msra.mxu0 %v442
      %490 = vmatprep.subr.bf16.mxu0 %v438
      %491 = vmatpush1.bf16.msra.mxu0 %v434
      %492 = vmatprep.subr.bf16.mxu0 0
      %493 = vmatpush2.bf16.msra.mxu0 0
      %494 = vmatprep.subr.bf16.mxu0 0
      %495 = vmatpush2.bf16.msra.mxu0 0
      %496 = vmatprep.subr.bf16.mxu0 0
      %497 = vmatpush2.bf16.msra.mxu0 0
      %498 = vmatprep.subr.bf16.mxu0 0
      %499 = vmatpush2.bf16.msra.mxu0 0
      %500 = vmatprep.subr.bf16.mxu0 0
      %501 = vmatpush2.bf16.msra.mxu0 0
      %502 = vmatprep.subr.bf16.mxu0 0
      %503 = vmatpush2.bf16.msra.mxu0 0
      %504 = vmatprep.subr.bf16.mxu0 0
      %505 = vmatpush2.bf16.msra.mxu0 0
      %506 = vmatprep.subr.bf16.mxu0 0
      %507 = vmatpush2.bf16.msra.mxu0 0
      %508 = vmatprep.mubr.bf16.mxu0 0
      %509 = vmatmul.mubr.bf16.gmra.mxu0 %v468
      %v510 = vpop.f32.mrf.mxu0
      %v511 = vadd.f32 0.0, %v510
      %v512 = vpop.f32.mrf.mxu0
      %v513 = vadd.f32 0.0, %v512
      %v514 = vpop.f32.mrf.mxu0
      %v515 = vpop.f32.mrf.mxu0
      %516 = vdwg.mxu0
      %v517 = vmax.f32 %v511, 0.0
      %v518 = vmax.f32 %v513, 0.0
      %v519 = vpack.c.bf16 %v517, %v517
      %v520 = vpack.c.bf16 %v518, %v518
      %v523 = vunpack.c.l.b16 %v519
      %v524 = vunpack.c.l.b16 %v520
      %v525 = vpack.c.b16 %v524, %v523
      %527 = vst [vmem:[%s336] sm:$0xff] %v525
      %v529 = vlaneseq
      %v530 = vshrl.u32 %v529, 7
      %v531 = vsub.s32 0, %v530
      %v532 = vrot.slane %v465, %v531
      %v533 = vlaneseq
      %v534 = vshrl.u32 %v533, 7
      %v535 = vsub.s32 1, %v534
      %v536 = vrot.slane %v465, %v535
      %v539 = vmul.f32 %v517, %v532
      %v540 = vmul.f32 %v518, %v536
      %v541 = vadd.f32 %v539, %v540
      %542 = vadd.xlane.f32.xlu0 %v541
      %v543 = vpop.xlane.xlu0 %542
      %v544 = vmul.f32 %v539, %v539
      %v545 = vmul.f32 %v540, %v540
      %v546 = vadd.f32 %v544, %v545
      %547 = vadd.xlane.f32.xlu0 %v546
      %v548 = vpop.xlane.xlu0 %547
      %vm549 = vcmask 7168
      %v550 = vsel %vm549, %v543, %v548
      %551 = vxpose.xlu0.b32.start [1/16] %v550, 128
      %552 = vxpose.xlu0.b32.cont [2/16] 0.0, 128
      %553 = vxpose.xlu0.b32.cont [3/16] 0.0, 128
      %554 = vxpose.xlu0.b32.cont [4/16] 0.0, 128
      %555 = vxpose.xlu0.b32.cont [5/16] 0.0, 128
      %556 = vxpose.xlu0.b32.cont [6/16] 0.0, 128
      %557 = vxpose.xlu0.b32.cont [7/16] 0.0, 128
      %558 = vxpose.xlu0.b32.cont [8/16] 0.0, 128
      %559 = vxpose.xlu0.b32.cont [9/16] 0.0, 128
      %560 = vxpose.xlu0.b32.cont [10/16] 0.0, 128
      %561 = vxpose.xlu0.b32.cont [11/16] 0.0, 128
      %562 = vxpose.xlu0.b32.cont [12/16] 0.0, 128
      %563 = vxpose.xlu0.b32.cont [13/16] 0.0, 128
      %564 = vxpose.xlu0.b32.cont [14/16] 0.0, 128
      %565 = vxpose.xlu0.b32.cont [15/16] 0.0, 128
      %566 = vxpose.xlu0.b32.end [16/16] 0.0, 128
      %v567 = vpop.trf.xlu0
      %v568 = vpop.trf.xlu0
      %v569 = vpop.trf.xlu0
      %v570 = vpop.trf.xlu0
      %v571 = vpop.trf.xlu0
      %v572 = vpop.trf.xlu0
      %v573 = vpop.trf.xlu0
      %v574 = vpop.trf.xlu0
      %v575 = vpop.trf.xlu0
      %v576 = vpop.trf.xlu0
      %v577 = vpop.trf.xlu0
      %v578 = vpop.trf.xlu0
      %v579 = vpop.trf.xlu0
      %v580 = vpop.trf.xlu0
      %v581 = vpop.trf.xlu0
      %v582 = vpop.trf.xlu0
      %vm583 = vcmask 58368
      %584 = vst.msk [vmem:[%s344] sm:$0x3] %vm583, %v567
      %s585 = smul.u32 2, %s22
      %p586 = scmp.lt.s32.totalorder %s21, 1
      %s587 = scalar_select %p586, %s21, 1
      %p588 = scmp.lt.s32.totalorder %s585, 1
      %s589 = scalar_select %p588, %s585, 1
      %s590 = smul.addr %s587, 2
      %s591 = sadd.s32 %s589, %s590
      %s592 = smul.addr %s591, 4
      %s593 = scalar_lea.vmem %s4, %s592
      %p594 = scmp.lt.s32.totalorder %s21, 1
      %s595 = scalar_select %p594, %s21, 1
      %p596 = scmp.lt.s32.totalorder %s22, 0
      %s597 = scalar_select %p596, %s22, 0
      %s598 = sadd.s32 %s597, %s595
      %s599 = smul.addr %s598, 2
      %s600 = scalar_lea.vmem %s5, %s599
      // Predicated region
      $region37: #{conv_block_forward.2} parent=35 // pred_check
        %p601 = pneg %p154
      $region38: #{conv_block_forward.2} parent=35 // pred_check_branch
        %603 = sbr.rel (%p601) target = $region40
      $region39: #{conv_block_forward.2} parent=35 // pred_region
        %s604 = smul.u32 2, %s22
      $region40: #{conv_block_forward.2} parent=35 // pred_fallthru
        _
      // Predicated region
      $region41: #{conv_block_forward.2} parent=35 // pred_check
        %p605 = pneg %p182
      $region42: #{conv_block_forward.2} parent=35 // pred_check_branch
        %607 = sbr.rel (%p605) target = $region44
      $region43: #{conv_block_forward.2} parent=35 // pred_region
        _
      $region44: #{conv_block_forward.2} parent=35 // pred_fallthru
        _
    $region36: #{conv_block_forward.2} parent=5 // pred_fallthru
      _
    %p608 = scmp.le.s32.totalorder 2, %s12
    // Predicated region
    $region45: #{conv_block_forward.2} parent=5 // pred_check
      %p609 = pneg %p608
    $region46: #{conv_block_forward.2} parent=5 // pred_check_branch
      %611 = sbr.rel (%p609) target = $region48
    $region47: #{conv_block_forward.2} parent=5 // pred_region
      %s612 = ssub.s32 %s12, 2
      // Predicated region
      $region49: #{conv_block_forward.2} parent=47 // pred_check
        %p613 = pneg %p160
      $region50: #{conv_block_forward.2} parent=47 // pred_check_branch
        %615 = sbr.rel (%p613) target = $region52
      $region51: #{conv_block_forward.2} parent=47 // pred_region
        %s616 = smul.u32 2, %s24
        %p617 = scmp.lt.s32.totalorder %s23, 1
        %s618 = scalar_select %p617, %s23, 1
        %p619 = scmp.lt.s32.totalorder %s616, 1
        %s620 = scalar_select %p619, %s616, 1
        %s621 = smul.addr %s618, 2
        %s622 = sadd.s32 %s620, %s621
        %s623 = smul.addr %s622, 4
        %s624 = scalar_lea.vmem %s4, %s623
      $region52: #{conv_block_forward.2} parent=47 // pred_fallthru
        _
      // Predicated region
      $region53: #{conv_block_forward.2} parent=47 // pred_check
        %p625 = pneg %p188
      $region54: #{conv_block_forward.2} parent=47 // pred_check_branch
        %627 = sbr.rel (%p625) target = $region56
      $region55: #{conv_block_forward.2} parent=47 // pred_region
        %p628 = scmp.lt.s32.totalorder %s23, 1
        %s629 = scalar_select %p628, %s23, 1
        %p630 = scmp.lt.s32.totalorder %s24, 0
        %s631 = scalar_select %p630, %s24, 0
        %s632 = sadd.s32 %s631, %s629
        %s633 = smul.addr %s632, 2
        %s634 = scalar_lea.vmem %s5, %s633
      $region56: #{conv_block_forward.2} parent=47 // pred_fallthru
        _
    $region48: #{conv_block_forward.2} parent=5 // pred_fallthru
      _
  $region6: #{conv_block_forward.2} parent=0 // loop_footer
    %s16 = sadd.s32 1, %s12
  $region7: #{conv_block_forward.2} parent=0 // loop_footer_branch
    %11 = sbr.rel target = $region3
  $region8: #{conv_block_forward.2} parent=0 // loop_exit
    _

// kernel: conv_block_forward.3
$region0: #{conv_block_forward.3}
  #allocation0 [shape = 'u32[]', space=smem, size = 0x4, offset = 0x4, fixed_abs, tag = 'smem constant byte address 0x4 - core index']
  #allocation1 [shape = 'u32[144,128]{1,0:T(1,128)}', space=vmem, size = 0x12000, scoped, tag = 'internal scratch']
  %s0 = inlined_call_operand.vmem [shape: f32[8,1], index: 0, kind: input, shape index: {}]
  %s1 = inlined_call_operand.vmem [shape: f32[8,1], index: 1, kind: input, shape index: {}]
  %s2 = inlined_call_operand.vmem [shape: bf16[2,8,256], index: 2, kind: input, shape index: {}, may-alias: {2,3}]
  %s3 = inlined_call_operand.vmem [shape: bf16[2,8,256], index: 3, kind: output, shape index: {}, may-alias: {2,3}]
  %s4 = sld [smem:[#allocation0]]
  $region45: #{conv_block_forward.3} parent=0
    _
  %s6 = ssub.s32 1, %s4
  %s7 = scalar_select 0, %s6, %s4
  loop: start=0, step=1, limit=4
  $region2: #{conv_block_forward.3} parent=0 // loop_pre_header
    _
  $region3: #{conv_block_forward.3} parent=0 // loop_header
    %s9 = sphi 0, %s13
    %p10 = scmp.ge.s32.totalorder %s9, 4
    %s16 = sphi 0, %s28
    %s17 = sphi 0, %s24
    %s18 = sphi 0, %s16
    %s19 = sphi 0, %s17
    %s20 = sphi 0, %s18
    %s21 = sphi 0, %s19
    %s29 = sphi 0, %s29
    %s31 = sphi 0, %s29
    %s32 = sphi 0, %s31
    %s46 = sphi 0, %s32
    %s50 = sphi 0, %s50
    %s52 = sphi 0, %s50
    %s53 = sphi 0, %s52
    %s67 = sphi 0, %s53
    %s75 = sphi 0, %s77
    %s78 = sphi 0, %s75
    %s79 = sphi 0, %s78
    %s95 = sphi 0, %s79
    %s103 = sphi 0, %s105
    %s106 = sphi 0, %s103
    %s107 = sphi 0, %s106
    %s123 = sphi 0, %s107
  $region4: #{conv_block_forward.3} parent=0 // loop_header_branch
    %12 = sbr.rel (%p10) target = $region8
  $region5: #{conv_block_forward.3} parent=0 // loop_body
    %s14 = ssub.s32 %s9, 1
    %s15 = ssub.s32 %s9, 2
    %s22 = sadd.s32 1, %s17
    %p23 = scmp.ge.s32.totalorder %s22, 1
    %s24 = scalar_select %p23, 0, %s22
    %s25 = sadd.s32 1, %s16
    %s26 = scalar_select %p23, %s25, %s16
    %p27 = scmp.ge.s32.totalorder %s26, 2
    %s28 = scalar_select %p27, 0, %s26
    %s30 = sadd.s32 %s29, 1
    %p33 = scmp.eq.s32.totalorder %s9, 1
    %p34 = scmp.ne.s32.totalorder %s29, %s31
    %p35 = scmp.eq.s32.totalorder %s9, 0
    %p36 = por %p34, %p35
    %p37 = scmp.ne.s32.totalorder %s29, %s31
    %p38 = scmp.eq.s32.totalorder %s14, 1
    %p39 = por %p37, %p38
    %p40 = scmp.ne.s32.totalorder %s31, %s32
    %p41 = scmp.eq.s32.totalorder %s14, 0
    %p42 = por %p40, %p41
    %p43 = scmp.ne.s32.totalorder %s31, %s32
    %p44 = scmp.eq.s32.totalorder %s15, 1
    %p45 = por %p43, %p44
    %p47 = scmp.ne.s32.totalorder %s32, %s46
    %p48 = scmp.eq.s32.totalorder %s15, 0
    %p49 = por %p47, %p48
    %s51 = sadd.s32 %s50, 1
    %p54 = scmp.eq.s32.totalorder %s9, 1
    %p55 = scmp.ne.s32.totalorder %s50, %s52
    %p56 = scmp.eq.s32.totalorder %s9, 0
    %p57 = por %p55, %p56
    %p58 = scmp.ne.s32.totalorder %s50, %s52
    %p59 = scmp.eq.s32.totalorder %s14, 1
    %p60 = por %p58, %p59
    %p61 = scmp.ne.s32.totalorder %s52, %s53
    %p62 = scmp.eq.s32.totalorder %s14, 0
    %p63 = por %p61, %p62
    %p64 = scmp.ne.s32.totalorder %s52, %s53
    %p65 = scmp.eq.s32.totalorder %s15, 1
    %p66 = por %p64, %p65
    %p68 = scmp.ne.s32.totalorder %s53, %s67
    %p69 = scmp.eq.s32.totalorder %s15, 0
    %p70 = por %p68, %p69
    %s71 = ssub.s32 %s16, %s28
    %s72 = ssub.s32 %s17, %s24
    %s73 = sor.u32 %s71, %s72
    %p74 = scmp.eq.s32.totalorder %s73, 0
    %s76 = sadd.s32 %s75, 1
    %s77 = scalar_select %p74, %s75, %s76
    %p80 = pneg %p74
    %p81 = scmp.eq.s32.totalorder %s9, 1
    %p82 = por %p80, %p81
    %p83 = scmp.ne.s32.totalorder %s75, %s78
    %p84 = scmp.eq.s32.totalorder %s9, 0
    %p85 = por %p83, %p84
    %p86 = scmp.ne.s32.totalorder %s75, %s78
    %p87 = scmp.eq.s32.totalorder %s14, 1
    %p88 = por %p86, %p87
    %p89 = scmp.ne.s32.totalorder %s78, %s79
    %p90 = scmp.eq.s32.totalorder %s14, 0
    %p91 = por %p89, %p90
    %p92 = scmp.ne.s32.totalorder %s78, %s79
    %p93 = scmp.eq.s32.totalorder %s15, 1
    %p94 = por %p92, %p93
    %p96 = scmp.ne.s32.totalorder %s79, %s95
    %p97 = scmp.eq.s32.totalorder %s15, 0
    %p98 = por %p96, %p97
    %s99 = ssub.s32 %s16, %s28
    %s100 = ssub.s32 %s17, %s24
    %s101 = sor.u32 %s99, %s100
    %p102 = scmp.eq.s32.totalorder %s101, 0
    %s104 = sadd.s32 %s103, 1
    %s105 = scalar_select %p102, %s103, %s104
    %p108 = pneg %p102
    %p109 = scmp.eq.s32.totalorder %s9, 1
    %p110 = por %p108, %p109
    %p111 = scmp.ne.s32.totalorder %s103, %s106
    %p112 = scmp.eq.s32.totalorder %s9, 0
    %p113 = por %p111, %p112
    %p114 = scmp.ne.s32.totalorder %s103, %s106
    %p115 = scmp.eq.s32.totalorder %s14, 1
    %p116 = por %p114, %p115
    %p117 = scmp.ne.s32.totalorder %s106, %s107
    %p118 = scmp.eq.s32.totalorder %s14, 0
    %p119 = por %p117, %p118
    %p120 = scmp.ne.s32.totalorder %s106, %s107
    %p121 = scmp.eq.s32.totalorder %s15, 1
    %p122 = por %p120, %p121
    %p124 = scmp.ne.s32.totalorder %s107, %s123
    %p125 = scmp.eq.s32.totalorder %s15, 0
    %p126 = por %p124, %p125
    %p127 = scmp.le.s32.totalorder 1, %s9
    %p128 = scmp.lt.s32.totalorder %s9, 3
    %p129 = pnand %p127, %p128
    %p130 = pneg %p129
    // Predicated region
    $region9: #{conv_block_forward.3} parent=5 // pred_check
      _
    $region10: #{conv_block_forward.3} parent=5 // pred_check_branch
      %132 = sbr.rel (%p129) target = $region12
    $region11: #{conv_block_forward.3} parent=5 // pred_region
      %s133 = ssub.s32 %s9, 1
      // Predicated region
      $region13: #{conv_block_forward.3} parent=11 // pred_check
        %p134 = pneg %p42
      $region14: #{conv_block_forward.3} parent=11 // pred_check_branch
        %136 = sbr.rel (%p134) target = $region16
      $region15: #{conv_block_forward.3} parent=11 // pred_region
        _
      $region16: #{conv_block_forward.3} parent=11 // pred_fallthru
        _
      // Predicated region
      $region17: #{conv_block_forward.3} parent=11 // pred_check
        %p137 = pneg %p63
      $region18: #{conv_block_forward.3} parent=11 // pred_check_branch
        %139 = sbr.rel (%p137) target = $region20
      $region19: #{conv_block_forward.3} parent=11 // pred_region
        _
      $region20: #{conv_block_forward.3} parent=11 // pred_fallthru
        _
    $region12: #{conv_block_forward.3} parent=5 // pred_fallthru
      _
    %p140 = scmp.lt.s32.totalorder %s9, 2
    // Predicated region
    $region21: #{conv_block_forward.3} parent=5 // pred_check
      %p141 = pneg %p140
    $region22: #{conv_block_forward.3} parent=5 // pred_check_branch
      %143 = sbr.rel (%p141) target = $region24
    $region23: #{conv_block_forward.3} parent=5 // pred_region
      // Predicated region
      $region25: #{conv_block_forward.3} parent=23 // pred_check
        %p144 = pneg %p85
      $region26: #{conv_block_forward.3} parent=23 // pred_check_branch
        %146 = sbr.rel (%p144) target = $region28
      $region27: #{conv_block_forward.3} parent=23 // pred_region
        %s147 = smul.u32 2, %s17
        %p148 = scmp.lt.s32.totalorder %s16, 1
        %s149 = scalar_select %p148, %s16, 1
        %p150 = scmp.lt.s32.totalorder %s147, 1
        %s151 = scalar_select %p150, %s147, 1
        %s152 = smul.addr %s149, 2
        %s153 = sadd.s32 %s151, %s152
        %s154 = smul.addr %s153, 4
        %s155 = scalar_lea.vmem %s2, %s154
        %s156 = smul.u32 2, %s17
      $region28: #{conv_block_forward.3} parent=23 // pred_fallthru
        _
    $region24: #{conv_block_forward.3} parent=5 // pred_fallthru
      _
    %p157 = scmp.le.s32.totalorder 1, %s9
    %p158 = scmp.lt.s32.totalorder %s9, 3
    %p159 = pnand %p157, %p158
    %p160 = pneg %p159
    // Predicated region
    $region29: #{conv_block_forward.3} parent=5 // pred_check
      _
    $region30: #{conv_block_forward.3} parent=5 // pred_check_branch
      %162 = sbr.rel (%p159) target = $region32
    $region31: #{conv_block_forward.3} parent=5 // pred_region
      %s163 = ssub.s32 %s9, 1
      %p164 = pneg %p42
      %p165 = pneg %p39
      %p166 = pneg %p63
      %p167 = pneg %p60
      %s168 = smul.u32 2, %s19
      %p169 = scmp.lt.s32.totalorder %s18, 1
      %s170 = scalar_select %p169, %s18, 1
      %p171 = scmp.lt.s32.totalorder %s168, 1
      %s172 = scalar_select %p171, %s168, 1
      %s173 = smul.addr %s170, 2
      %s174 = sadd.s32 %s172, %s173
      %s175 = smul.addr %s174, 4
      %s176 = scalar_lea.vmem %s2, %s175
      %p177 = pneg %p91
      %p178 = pneg %p88
      %p179 = pneg %p119
      %p180 = pneg %p116
      %s181 = smul.u32 2, %s19
      %p182 = scmp.lt.s32.totalorder %s18, 1
      %s183 = scalar_select %p182, %s18, 1
      %p184 = scmp.lt.s32.totalorder %s181, 1
      %s185 = scalar_select %p184, %s181, 1
      %s186 = smul.addr %s183, 2
      %s187 = sadd.s32 %s185, %s186
      %s188 = smul.addr %s187, 4
      %s189 = scalar_lea.vmem %s3, %s188
      %s190 = smul.u32 2, %s19
      %p191 = scmp.lt.s32.totalorder %s18, 1
      %s192 = scalar_select %p191, %s18, 1
      %p193 = scmp.lt.s32.totalorder %s190, 1
      %s194 = scalar_select %p193, %s190, 1
      %s195 = smul.addr %s192, 2
      %s196 = sadd.s32 %s194, %s195
      %s197 = smul.addr %s196, 4
      %s198 = scalar_lea.vmem %s2, %s197
      %s199 = smul.u32 2, %s19
      %s200 = smul.u32 2, %s19
      %p201 = scmp.lt.s32.totalorder %s18, 1
      %s202 = scalar_select %p201, %s18, 1
      %p203 = scmp.lt.s32.totalorder %s200, 1
      %s204 = scalar_select %p203, %s200, 1
      %s205 = smul.addr %s202, 2
      %s206 = sadd.s32 %s204, %s205
      %s207 = smul.addr %s206, 4
      %s208 = scalar_lea.vmem %s3, %s207
      %s209 = smul.u32 2, %s19
      %v210 = vld [vmem:[%s198] sm:$0xff]
      %v211 = vunpack.c.l.bf16 %v210
      %v212 = vunpack.c.h.bf16 %v210
      %v213 = vld [vmem:[%s0] sm:$0xff]
      %215 = vset.pattern.permute.xlu0 0
      %216 = vperm.xlu0 %215, %v213
      %v217 = vpop.permute.xlu0 %216
      %v219 = vmul.f32 %v211, %v217
      %v220 = vmul.f32 %v212, %v217
      %v221 = vld [vmem:[%s1] sm:$0xff]
      %223 = vset.pattern.permute.xlu0 0
      %224 = vperm.xlu0 %223, %v221
      %v225 = vpop.permute.xlu0 %224
      %v227 = vadd.f32 %v219, %v225
      %v228 = vadd.f32 %v220, %v225
      %v229 = vpack.c.bf16 %v227, %v227
      %v230 = vpack.c.bf16 %v228, %v228
      %v233 = vunpack.c.l.b16 %v229
      %v234 = vunpack.c.l.b16 %v230
      %v235 = vpack.c.b16 %v234, %v233
      %237 = vst [vmem:[%s208] sm:$0xff] %v235
      %s238 = smul.u32 2, %s19
      %p239 = scmp.lt.s32.totalorder %s18, 1
      %s240 = scalar_select %p239, %s18, 1
      %p241 = scmp.lt.s32.totalorder %s238, 1
      %s242 = scalar_select %p241, %s238, 1
      %s243 = smul.addr %s240, 2
      %s244 = sadd.s32 %s242, %s243
      %s245 = smul.addr %s244, 4
      %s246 = scalar_lea.vmem %s3, %s245
      // Predicated region
      $region33: #{conv_block_forward.3} parent=31 // pred_check
        %p247 = pneg %p116
      $region34: #{conv_block_forward.3} parent=31 // pred_check_branch
        %249 = sbr.rel (%p247) target = $region36
      $region35: #{conv_block_forward.3} parent=31 // pred_region
        %s250 = smul.u32 2, %s19
      $region36: #{conv_block_forward.3} parent=31 // pred_fallthru
        _
    $region32: #{conv_block_forward.3} parent=5 // pred_fallthru
      _
    %p251 = scmp.le.s32.totalorder 2, %s9
    // Predicated region
    $region37: #{conv_block_forward.3} parent=5 // pred_check
      %p252 = pneg %p251
    $region38: #{conv_block_forward.3} parent=5 // pred_check_branch
      %254 = sbr.rel (%p252) target = $region40
    $region39: #{conv_block_forward.3} parent=5 // pred_region
      %s255 = ssub.s32 %s9, 2
      // Predicated region
      $region41: #{conv_block_forward.3} parent=39 // pred_check
        %p256 = pneg %p122
      $region42: #{conv_block_forward.3} parent=39 // pred_check_branch
        %258 = sbr.rel (%p256) target = $region44
      $region43: #{conv_block_forward.3} parent=39 // pred_region
        %s259 = smul.u32 2, %s21
        %p260 = scmp.lt.s32.totalorder %s20, 1
        %s261 = scalar_select %p260, %s20, 1
        %p262 = scmp.lt.s32.totalorder %s259, 1
        %s263 = scalar_select %p262, %s259, 1
        %s264 = smul.addr %s261, 2
        %s265 = sadd.s32 %s263, %s264
        %s266 = smul.addr %s265, 4
        %s267 = scalar_lea.vmem %s3, %s266
      $region44: #{conv_block_forward.3} parent=39 // pred_fallthru
        _
    $region40: #{conv_block_forward.3} parent=5 // pred_fallthru
      _
  $region6: #{conv_block_forward.3} parent=0 // loop_footer
    %s13 = sadd.s32 1, %s9
  $region7: #{conv_block_forward.3} parent=0 // loop_footer_branch
    %8 = sbr.rel target = $region3
  $region8: #{conv_block_forward.3} parent=0 // loop_exit
    _

</llo_original>
